<compile_context>
chip_gen: v5e
topology: v5e:2x2
jax: 0.10.0
libtpu: 0.0.40
codegen_flags: <defaults>
</compile_context>

<pallas_src>
import math

import jax
import jax.numpy as jnp
from jax.experimental import pallas as pl
from jax.experimental.pallas import tpu as pltpu

_VMEM_LIMIT = 32 * 1024 * 1024  # safe on v5e (128 MiB), v6e (128 MiB), v7x (64 MiB)


def _round_up(x, m):
    return ((x + m - 1) // m) * m


# ----------------------------- kernels --------------------------------------

def _support_kernel(feat_ref, w_ref, s_ref):
    # S = relu(feature @ W) for one row tile.
    s = jnp.dot(feat_ref[...], w_ref[...], preferred_element_type=jnp.float32)
    s_ref[...] = jnp.maximum(s, 0.0).astype(s_ref.dtype)


def _adj_matmul_kernel(adj_ref, s_ref, t_ref, acc_ref):
    # T = adj @ S, row tile i, reduction over k (last grid axis).
    k = pl.program_id(1)

    @pl.when(k == 0)
    def _():
        acc_ref[...] = jnp.zeros_like(acc_ref)

    acc_ref[...] += jnp.dot(adj_ref[...], s_ref[...],
                            preferred_element_type=jnp.float32)

    @pl.when(k == pl.num_programs(1) - 1)
    def _():
        t_ref[...] = acc_ref[...].astype(t_ref.dtype)


def _gate_kernel(adj_ref, s_k_ref, t_k_ref, s_i_ref, b_ref, out_ref,
                 acc_s_ref, acc_t_ref):
    # Accumulate adj@S and adj@T for row tile i (adj tile shared by both dots),
    # finalize the elementwise gate + bias at the last k.
    k = pl.program_id(1)

    @pl.when(k == 0)
    def _():
        acc_s_ref[...] = jnp.zeros_like(acc_s_ref)
        acc_t_ref[...] = jnp.zeros_like(acc_t_ref)

    adj_tile = adj_ref[...]
    acc_s_ref[...] += jnp.dot(adj_tile, s_k_ref[...],
                              preferred_element_type=jnp.float32)
    acc_t_ref[...] += jnp.dot(adj_tile, t_k_ref[...],
                              preferred_element_type=jnp.float32)

    @pl.when(k == pl.num_programs(1) - 1)
    def _():
        s_i = s_i_ref[...].astype(jnp.float32)   # resident row block of S
        a_s = acc_s_ref[...]                     # (adj @ S)        row tile
        a_t = acc_t_ref[...]                     # (adj @ adj @ S)  row tile
        low = a_s + s_i                          # (adj + I) @ S
        mid = a_t - s_i                          # (adj@adj - I) @ S
        high = s_i - a_s                         # (I - adj) @ S
        o1 = high * jnp.maximum(low + mid, 0.0)
        o2 = mid * jnp.maximum(low + high, 0.0)
        o3 = low * jnp.maximum(high + mid, 0.0)
        out = jnp.maximum(o1 + o2 + o3, 0.0) + b_ref[...]
        out_ref[...] = out.astype(out_ref.dtype)


# ----------------------------- wrapper ---------------------------------------

def item_graph_convolution_gate(feature, adj, weight, bias=None, *,
                                tm=256, tk=256, use_bf16=True):
    """feature [N,F], adj [N,N] (dense), weight [F,E], bias [E] -> [N,E] (f32)."""
    n, f = feature.shape
    e = weight.shape[1]
    if bias is None:
        bias = jnp.zeros((e,), jnp.float32)

    stream_dtype = jnp.bfloat16 if use_bf16 else jnp.float32

    # Clamp tiles for small graphs; keep MXU / lane alignment (multiples of 128).
    tm = min(tm, _round_up(n, 128))
    tk = min(tk, _round_up(n, 128))
    n_pad = _round_up(n, math.lcm(tm, tk))
    e_pad = _round_up(e, 128)

    feat_p = jnp.pad(feature.astype(jnp.float32), ((0, n_pad - n), (0, 0)))
    adj_p = jnp.pad(adj.astype(stream_dtype), ((0, n_pad - n), (0, n_pad - n)))
    w_p = jnp.pad(weight.astype(jnp.float32), ((0, 0), (0, e_pad - e)))
    b_p = jnp.pad(bias.astype(jnp.float32), (0, e_pad - e)).reshape(1, e_pad)

    n_row = n_pad // tm
    n_k = n_pad // tk

    # ---- (1) S = relu(feature @ W), row tiled -------------------------------
    s = pl.pallas_call(
        _support_kernel,
        out_shape=jax.ShapeDtypeStruct((n_pad, e_pad), stream_dtype),
        grid_spec=pltpu.PrefetchScalarGridSpec(
            num_scalar_prefetch=0,
            grid=(n_row,),
            in_specs=[
                pl.BlockSpec((tm, f), lambda i: (i, 0)),
                pl.BlockSpec((f, e_pad), lambda i: (0, 0)),
            ],
            out_specs=pl.BlockSpec((tm, e_pad), lambda i: (i, 0)),
        ),
        compiler_params=pltpu.CompilerParams(
            dimension_semantics=("parallel",),
            vmem_limit_bytes=_VMEM_LIMIT),
    )(feat_p, w_p)

    # ---- (2) T = adj @ S : streams adj once, K reduction --------------------
    t = pl.pallas_call(
        _adj_matmul_kernel,
        out_shape=jax.ShapeDtypeStruct((n_pad, e_pad), stream_dtype),
        grid_spec=pltpu.PrefetchScalarGridSpec(
            num_scalar_prefetch=0,
            grid=(n_row, n_k),
            in_specs=[
                pl.BlockSpec((tm, tk), lambda i, k: (i, k)),     # adj tile
                pl.BlockSpec((tk, e_pad), lambda i, k: (k, 0)),  # S_k
            ],
            out_specs=pl.BlockSpec((tm, e_pad), lambda i, k: (i, 0)),
            scratch_shapes=[pltpu.VMEM((tm, e_pad), jnp.float32)],
        ),
        compiler_params=pltpu.CompilerParams(
            dimension_semantics=("parallel", "arbitrary"),
            vmem_limit_bytes=_VMEM_LIMIT),
    )(adj_p, s)

    # ---- (3) gate: adj@S and adj@T accumulated, fused finalize --------------
    out = pl.pallas_call(
        _gate_kernel,
        out_shape=jax.ShapeDtypeStruct((n_pad, e_pad), jnp.float32),
        grid_spec=pltpu.PrefetchScalarGridSpec(
            num_scalar_prefetch=0,
            grid=(n_row, n_k),
            in_specs=[
                pl.BlockSpec((tm, tk), lambda i, k: (i, k)),      # adj tile
                pl.BlockSpec((tk, e_pad), lambda i, k: (k, 0)),   # S_k
                pl.BlockSpec((tk, e_pad), lambda i, k: (k, 0)),   # T_k
                pl.BlockSpec((tm, e_pad), lambda i, k: (i, 0)),   # S_i (resident)
                pl.BlockSpec((1, e_pad), lambda i, k: (0, 0)),    # bias (resident)
            ],
            out_specs=pl.BlockSpec((tm, e_pad), lambda i, k: (i, 0)),
            scratch_shapes=[pltpu.VMEM((tm, e_pad), jnp.float32),
                            pltpu.VMEM((tm, e_pad), jnp.float32)],
        ),
        compiler_params=pltpu.CompilerParams(
            dimension_semantics=("parallel", "arbitrary"),
            vmem_limit_bytes=_VMEM_LIMIT),
    )(adj_p, s, t, s, b_p)

    return out[:n, :e]


# ----------------------------- reference -------------------------------------

def _reference(feature, adj, weight, bias, compute_dtype=jnp.float32):
    """Pure-JAX reference. compute_dtype models the kernel's streaming dtype
    (adj / S / T rounded to bf16 when use_bf16=True; accumulation stays f32)."""
    f32 = jnp.float32
    rd = lambda x: x.astype(compute_dtype).astype(f32)
    s = rd(jnp.maximum(feature @ weight, 0.0))
    a = rd(adj)
    a_s = a @ s
    t = rd(a_s)
    a_t = a @ t
    low = a_s + s
    mid = a_t - s
    high = s - a_s
    o1 = high * jnp.maximum(low + mid, 0.0)
    o2 = mid * jnp.maximum(low + high, 0.0)
    o3 = low * jnp.maximum(high + mid, 0.0)
    return jnp.maximum(o1 + o2 + o3, 0.0) + bias


if __name__ == "__main__":
    # Full-precision XLA matmuls in the reference so the f32 check is tight.
    jax.config.update("jax_default_matmul_precision", "highest")

    N = 300          # number of graph nodes (deliberately not a multiple of 128)
    F_SIZE = 8       # features_size
    E_SIZE = 32      # embedding_size (lane-padded to 128 inside the wrapper)

    key = jax.random.PRNGKey(0)
    k_feat, k_adj, k_w, k_b = jax.random.split(key, 4)

    feature = jax.random.normal(k_feat, (N, F_SIZE), dtype=jnp.float32)
    adj = (jax.random.uniform(k_adj, (N, N)) < 0.3).astype(jnp.float32)
    adj = adj * (1.0 - jnp.eye(N, dtype=jnp.float32))   # zero diagonal

    # Parameter init mirroring reset_parameters(): uniform(-stdv, stdv),
    # stdv = 1/sqrt(embedding_size).
    stdv = 1.0 / math.sqrt(E_SIZE)
    weight = jax.random.uniform(k_w, (F_SIZE, E_SIZE), minval=-stdv, maxval=stdv,
                                dtype=jnp.float32)
    bias = jax.random.uniform(k_b, (E_SIZE,), minval=-stdv, maxval=stdv,
                              dtype=jnp.float32)

    # Exact f32 path (128 tiles -> 3x3 grid after padding N to 384).
    out_f32 = jax.block_until_ready(
        item_graph_convolution_gate(feature, adj, weight, bias,
                                    tm=128, tk=128, use_bf16=False))
    ref_f32 = _reference(feature, adj, weight, bias)
    assert out_f32.shape == (N, E_SIZE)
    assert jnp.allclose(out_f32, ref_f32, atol=0.1, rtol=1e-3), "f32 path mismatch"

    # bf16-streaming path (default perf config: 256 tiles, adj/S/T in bf16).
    out_bf16 = jax.block_until_ready(
        item_graph_convolution_gate(feature, adj, weight, bias, use_bf16=True))
    ref_bf16 = _reference(feature, adj, weight, bias, compute_dtype=jnp.bfloat16)
    assert out_bf16.shape == (N, E_SIZE)
    max_err = float(jnp.max(jnp.abs(out_bf16 - ref_bf16)))
    scale = float(jnp.max(jnp.abs(ref_bf16)))
    assert max_err <= 1e-2 * scale + 0.5, f"bf16 path mismatch: {max_err} (scale {scale})"

    print("KERNEL_OK")
</pallas_src>

<mosaic_0001>
module attributes {stable_mosaic.version = 11 : i64} {
  func.func @_support_kernel(%arg0: i32, %arg1: memref<128x8xf32, #tpu.memory_space<vmem>>, %arg2: memref<8x128xf32, #tpu.memory_space<vmem>>, %arg3: memref<128x128xf32, #tpu.memory_space<vmem>>) attributes {dimension_semantics = [#tpu.dimension_semantics<parallel>], iteration_bounds = array<i64: 3>, scalar_prefetch = 0 : i64, scratch_operands = 0 : i64, tpu.core_type = #tpu.core_type<tc>, window_params = [{transform_indices = @transform_0, window_bounds = array<i64: 128, 8>}, {pipeline_mode = #tpu.pipeline_mode<synchronous>, transform_indices = @transform_1, window_bounds = array<i64: 8, 128>}, {transform_indices = @transform_2, window_bounds = array<i64: 128, 128>}]} {
    %c0 = arith.constant 0 : index
    %c0_0 = arith.constant 0 : index
    %0 = vector.load %arg1[%c0, %c0_0] : memref<128x8xf32, #tpu.memory_space<vmem>>, vector<128x8xf32>
    %c0_1 = arith.constant 0 : index
    %c0_2 = arith.constant 0 : index
    %1 = vector.load %arg2[%c0_1, %c0_2] : memref<8x128xf32, #tpu.memory_space<vmem>>, vector<8x128xf32>
    %cst = arith.constant dense<0.000000e+00> : vector<128x128xf32>
    %2 = tpu.matmul %0, %1, %cst {dimension_numbers = #tpu.dot_dimension_numbers<[1], [0], [0], [1], [0, 0, 1, 1], [], []>, precision = #tpu.contract_precision<fp32>} : vector<128x8xf32>, vector<8x128xf32>, vector<128x128xf32> -> vector<128x128xf32>
    %cst_3 = arith.constant 0.000000e+00 : f32
    %3 = vector.broadcast %cst_3 : f32 to vector<128x128xf32>
    %4 = arith.maximumf %2, %3 : vector<128x128xf32>
    %c0_4 = arith.constant 0 : index
    %c0_5 = arith.constant 0 : index
    %5 = vector.load %arg3[%c0_4, %c0_5] : memref<128x128xf32, #tpu.memory_space<vmem>>, vector<128x128xf32>
    tpu.vector_store %arg3[%c0_4, %c0_5], %4 {strides = array<i32>} : memref<128x128xf32, #tpu.memory_space<vmem>>, vector<128x128xf32>,
    return
  }
  func.func @transform_0(%arg0: i32) -> (i32, i32) {
    %c0_i32 = arith.constant 0 : i32
    %c0_i32_0 = arith.constant 0 : i32
    return %arg0, %c0_i32 : i32, i32
  }
  func.func @transform_1(%arg0: i32) -> (i32, i32) {
    %c0_i32 = arith.constant 0 : i32
    %c0_i32_0 = arith.constant 0 : i32
    %c0_i32_1 = arith.constant 0 : i32
    return %c0_i32, %c0_i32_0 : i32, i32
  }
  func.func @transform_2(%arg0: i32) -> (i32, i32) {
    %c0_i32 = arith.constant 0 : i32
    %c0_i32_0 = arith.constant 0 : i32
    return %arg0, %c0_i32 : i32, i32
  }
}

</mosaic_0001>

<llo_original>
// kernel: tpu_custom_call.1
$region0: #{tpu_custom_call.1}
  #allocation0 [shape = 'u32[]', space=smem, size = 0x4, offset = 0x4, fixed_abs, tag = 'smem constant byte address 0x4 - core index']
  #allocation1 [shape = 'u32[72,128]{1,0:T(1,128)}', space=vmem, size = 0x9000, scoped, tag = 'internal scratch']
  %s0 = inlined_call_operand.vmem [shape: f32[384,8], index: 0, kind: input, shape index: {}]
  %s1 = inlined_call_operand.vmem [shape: f32[8,128], index: 1, kind: input, shape index: {}]
  %s2 = inlined_call_operand.hbm [shape: f32[384,128], index: 2, kind: output, shape index: {}]
  %s3 = sld [smem:[#allocation0]]
  $region41: #{tpu_custom_call.1} parent=0
    _
  %s5 = ssub.s32 1, %s3
  %s6 = scalar_select 0, %s5, %s3
  $region1: #{tpu_custom_call.1} parent=0
    #allocation2 [shape = 'u8[131072]{0}', space=vmem, size = 0x20000, scoped, tag = 'output window, operand 0']
    #allocation3 [shape = 's32[2]{0}', space=sflag, size = 0x8, scoped, tag = 'scoped memory for tpu_custom_call.1']
    %7 = vsyncpa [#allocation3], 0
    %s8 = scalar_lea.sflag [#allocation3], 1
    %9 = vsyncpa %s8, 0
    loop: start=0, step=1, limit=5
    $region2: #{tpu_custom_call.1} parent=1 // loop_pre_header
      _
    $region3: #{tpu_custom_call.1} parent=1 // loop_header
      %s11 = sphi 0, %s15
      %p12 = scmp.ge.s32.totalorder %s11, 5
      %s21 = sphi 0, %s23
      %s24 = sphi 0, %s21
      %s25 = sphi 0, %s24
      %s41 = sphi 0, %s25
      %s45 = sphi 0, %s45
      %s47 = sphi 0, %s45
      %s48 = sphi 0, %s47
      %s62 = sphi 0, %s48
      %s68 = sphi 0, %s70
      %s71 = sphi 0, %s68
      %s72 = sphi 0, %s71
      %s88 = sphi 0, %s72
    $region4: #{tpu_custom_call.1} parent=1 // loop_header_branch
      %14 = sbr.rel (%p12) target = $region8
    $region5: #{tpu_custom_call.1} parent=1 // loop_body
      %s16 = ssub.s32 %s11, 1
      %s17 = ssub.s32 %s11, 2
      %s18 = sadd.s32 %s11, 1
      %s19 = ssub.s32 %s11, %s18
      %p20 = scmp.eq.s32.totalorder %s19, 0
      %s22 = sadd.s32 %s21, 1
      %s23 = scalar_select %p20, %s21, %s22
      %p26 = pneg %p20
      %p27 = scmp.eq.s32.totalorder %s11, 2
      %p28 = por %p26, %p27
      %p29 = scmp.ne.s32.totalorder %s21, %s24
      %p30 = scmp.eq.s32.totalorder %s11, 0
      %p31 = por %p29, %p30
      %p32 = scmp.ne.s32.totalorder %s21, %s24
      %p33 = scmp.eq.s32.totalorder %s16, 2
      %p34 = por %p32, %p33
      %p35 = scmp.ne.s32.totalorder %s24, %s25
      %p36 = scmp.eq.s32.totalorder %s16, 0
      %p37 = por %p35, %p36
      %p38 = scmp.ne.s32.totalorder %s24, %s25
      %p39 = scmp.eq.s32.totalorder %s17, 2
      %p40 = por %p38, %p39
      %p42 = scmp.ne.s32.totalorder %s25, %s41
      %p43 = scmp.eq.s32.totalorder %s17, 0
      %p44 = por %p42, %p43
      %s46 = sadd.s32 %s45, 1
      %p49 = scmp.eq.s32.totalorder %s11, 2
      %p50 = scmp.ne.s32.totalorder %s45, %s47
      %p51 = scmp.eq.s32.totalorder %s11, 0
      %p52 = por %p50, %p51
      %p53 = scmp.ne.s32.totalorder %s45, %s47
      %p54 = scmp.eq.s32.totalorder %s16, 2
      %p55 = por %p53, %p54
      %p56 = scmp.ne.s32.totalorder %s47, %s48
      %p57 = scmp.eq.s32.totalorder %s16, 0
      %p58 = por %p56, %p57
      %p59 = scmp.ne.s32.totalorder %s47, %s48
      %p60 = scmp.eq.s32.totalorder %s17, 2
      %p61 = por %p59, %p60
      %p63 = scmp.ne.s32.totalorder %s48, %s62
      %p64 = scmp.eq.s32.totalorder %s17, 0
      %p65 = por %p63, %p64
      %s66 = ssub.s32 %s11, %s18
      %p67 = scmp.eq.s32.totalorder %s66, 0
      %s69 = sadd.s32 %s68, 1
      %s70 = scalar_select %p67, %s68, %s69
      %p73 = pneg %p67
      %p74 = scmp.eq.s32.totalorder %s11, 2
      %p75 = por %p73, %p74
      %p76 = scmp.ne.s32.totalorder %s68, %s71
      %p77 = scmp.eq.s32.totalorder %s11, 0
      %p78 = por %p76, %p77
      %p79 = scmp.ne.s32.totalorder %s68, %s71
      %p80 = scmp.eq.s32.totalorder %s16, 2
      %p81 = por %p79, %p80
      %p82 = scmp.ne.s32.totalorder %s71, %s72
      %p83 = scmp.eq.s32.totalorder %s16, 0
      %p84 = por %p82, %p83
      %p85 = scmp.ne.s32.totalorder %s71, %s72
      %p86 = scmp.eq.s32.totalorder %s17, 2
      %p87 = por %p85, %p86
      %p89 = scmp.ne.s32.totalorder %s72, %s88
      %p90 = scmp.eq.s32.totalorder %s17, 0
      %p91 = por %p89, %p90
      %p92 = scmp.le.s32.totalorder 1, %s11
      %p93 = scmp.lt.s32.totalorder %s11, 4
      %p94 = pnand %p92, %p93
      %p95 = pneg %p94
      // Predicated region
      $region9: #{tpu_custom_call.1} parent=5 // pred_check
        _
      $region10: #{tpu_custom_call.1} parent=5 // pred_check_branch
        %97 = sbr.rel (%p94) target = $region12
      $region11: #{tpu_custom_call.1} parent=5 // pred_region
        %s98 = ssub.s32 %s11, 1
        // Predicated region
        $region13: #{tpu_custom_call.1} parent=11 // pred_check
          %p99 = pneg %p58
        $region14: #{tpu_custom_call.1} parent=11 // pred_check_branch
          %101 = sbr.rel (%p99) target = $region16
        $region15: #{tpu_custom_call.1} parent=11 // pred_region
          _
        $region16: #{tpu_custom_call.1} parent=11 // pred_fallthru
          _
      $region12: #{tpu_custom_call.1} parent=5 // pred_fallthru
        _
      %p102 = scmp.lt.s32.totalorder %s11, 3
      // Predicated region
      $region17: #{tpu_custom_call.1} parent=5 // pred_check
        %p103 = pneg %p102
      $region18: #{tpu_custom_call.1} parent=5 // pred_check_branch
        %105 = sbr.rel (%p103) target = $region20
      $region19: #{tpu_custom_call.1} parent=5 // pred_region
        // Predicated region
        $region21: #{tpu_custom_call.1} parent=19 // pred_check
          %p106 = pneg %p31
        $region22: #{tpu_custom_call.1} parent=19 // pred_check_branch
          %108 = sbr.rel (%p106) target = $region24
        $region23: #{tpu_custom_call.1} parent=19 // pred_region
          %s109 = smul.u32 16, %s11
          %p110 = scmp.lt.s32.totalorder %s109, 47
          %s111 = scalar_select %p110, %s109, 47
          %s112 = smul.addr %s111, 8
          %s113 = scalar_lea.vmem %s0, %s112
          %s114 = smul.u32 16, %s11
        $region24: #{tpu_custom_call.1} parent=19 // pred_fallthru
          _
      $region20: #{tpu_custom_call.1} parent=5 // pred_fallthru
        _
      %p115 = scmp.le.s32.totalorder 1, %s11
      %p116 = scmp.lt.s32.totalorder %s11, 4
      %p117 = pnand %p115, %p116
      %p118 = pneg %p117
      // Predicated region
      $region25: #{tpu_custom_call.1} parent=5 // pred_check
        _
      $region26: #{tpu_custom_call.1} parent=5 // pred_check_branch
        %120 = sbr.rel (%p117) target = $region28
      $region27: #{tpu_custom_call.1} parent=5 // pred_region
        %s121 = ssub.s32 %s11, 1
        %s122 = smul.u32 16, %s16
        %p123 = scmp.lt.s32.totalorder %s122, 47
        %s124 = scalar_select %p123, %s122, 47
        %s125 = smul.addr %s124, 8
        %s126 = scalar_lea.vmem %s0, %s125
        %p127 = pneg %p37
        %p128 = pneg %p34
        %p129 = pneg %p58
        %p130 = pneg %p55
        %p131 = pneg %p84
        %p132 = pneg %p81
        %s133 = sand.u32 %s71, 1
        %s134 = scalar_lea.sflag [#allocation3], %s133
        %s135 = sand.u32 %s71, 1
        %s136 = smul.addr %s135, 128
        %s137 = scalar_lea.vmem [#allocation2], %s136
        %s138 = smul.u32 16, %s16
        %p139 = scmp.lt.s32.totalorder %s138, 47
        %s140 = scalar_select %p139, %s138, 47
        %s141 = smul.addr %s140, 8
        %s142 = scalar_lea.vmem %s0, %s141
        %s143 = smul.u32 16, %s16
        %s144 = smul.u32 16, %s16
        %v145 = vld [vmem:[%s142] sm:$0xff]
        %v146 = vld [vmem:[%s142 + $0x8] sm:$0xff]
        %v147 = vld [vmem:[%s142 + $0x10] sm:$0xff]
        %v148 = vld [vmem:[%s142 + $0x18] sm:$0xff]
        %v149 = vld [vmem:[%s142 + $0x20] sm:$0xff]
        %v150 = vld [vmem:[%s142 + $0x28] sm:$0xff]
        %v151 = vld [vmem:[%s142 + $0x30] sm:$0xff]
        %v152 = vld [vmem:[%s142 + $0x38] sm:$0xff]
        %v153 = vld [vmem:[%s142 + $0x40] sm:$0xff]
        %v154 = vld [vmem:[%s142 + $0x48] sm:$0xff]
        %v155 = vld [vmem:[%s142 + $0x50] sm:$0xff]
        %v156 = vld [vmem:[%s142 + $0x58] sm:$0xff]
        %v157 = vld [vmem:[%s142 + $0x60] sm:$0xff]
        %v158 = vld [vmem:[%s142 + $0x68] sm:$0xff]
        %v159 = vld [vmem:[%s142 + $0x70] sm:$0xff]
        %v160 = vld [vmem:[%s142 + $0x78] sm:$0xff]
        %v161 = vld [vmem:[%s1] sm:$0xff]
        %vm162 = vcmask 64512
        %v164 = vsel %vm162, %v145, 0
        %v167 = vsel %vm162, %v146, 0
        %v170 = vsel %vm162, %v147, 0
        %v173 = vsel %vm162, %v148, 0
        %v176 = vsel %vm162, %v149, 0
        %v179 = vsel %vm162, %v150, 0
        %v182 = vsel %vm162, %v151, 0
        %v185 = vsel %vm162, %v152, 0
        %v188 = vsel %vm162, %v153, 0
        %v191 = vsel %vm162, %v154, 0
        %v194 = vsel %vm162, %v155, 0
        %v197 = vsel %vm162, %v156, 0
        %v200 = vsel %vm162, %v157, 0
        %v203 = vsel %vm162, %v158, 0
        %v206 = vsel %vm162, %v159, 0
        %v209 = vsel %vm162, %v160, 0
        %211 = vmatpush.msra.mxu0 0.0
        %212 = vmatpush.msra.mxu0 0.0
        %213 = vmatpush.msra.mxu0 0.0
        %214 = vmatpush.msra.mxu0 0.0
        %215 = vmatpush.msra.mxu0 0.0
        %216 = vmatpush.msra.mxu0 0.0
        %217 = vmatpush.msra.mxu0 0.0
        %218 = vmatpush.msra.mxu0 0.0
        %219 = vmatpush.msra.mxu0 0.0
        %220 = vmatpush.msra.mxu0 0.0
        %221 = vmatpush.msra.mxu0 0.0
        %222 = vmatpush.msra.mxu0 0.0
        %223 = vmatpush.msra.mxu0 0.0
        %224 = vmatpush.msra.mxu0 0.0
        %225 = vmatpush.msra.mxu0 0.0
        %v226 = vand.u32 %v161, 4294901760
        %227 = vmatpush.msra.mxu0 %v226
        %v228 = vand.u32 %v164, 4294901760
        %v229 = vsub.f32 %v164, %v228
        %v230 = vand.u32 %v229, 4294901760
        %v231 = vsub.f32 %v229, %v230
        %v232 = vand.u32 %v231, 4294901760
        %233 = vmatmul.f32.gmra.mxu0 %v232
        %v234 = vpop.f32.mrf.mxu0
        %v235 = vadd.f32 0.0, %v234
        %v236 = vand.u32 %v167, 4294901760
        %v237 = vsub.f32 %v167, %v236
        %v238 = vand.u32 %v237, 4294901760
        %v239 = vsub.f32 %v237, %v238
        %v240 = vand.u32 %v239, 4294901760
        %241 = vmatmul.f32.gmra.mxu0 %v240
        %v242 = vpop.f32.mrf.mxu0
        %v243 = vadd.f32 0.0, %v242
        %v244 = vand.u32 %v170, 4294901760
        %v245 = vsub.f32 %v170, %v244
        %v246 = vand.u32 %v245, 4294901760
        %v247 = vsub.f32 %v245, %v246
        %v248 = vand.u32 %v247, 4294901760
        %249 = vmatmul.f32.gmra.mxu0 %v248
        %v250 = vpop.f32.mrf.mxu0
        %v251 = vadd.f32 0.0, %v250
        %v252 = vand.u32 %v173, 4294901760
        %v253 = vsub.f32 %v173, %v252
        %v254 = vand.u32 %v253, 4294901760
        %v255 = vsub.f32 %v253, %v254
        %v256 = vand.u32 %v255, 4294901760
        %257 = vmatmul.f32.gmra.mxu0 %v256
        %v258 = vpop.f32.mrf.mxu0
        %v259 = vadd.f32 0.0, %v258
        %v260 = vand.u32 %v176, 4294901760
        %v261 = vsub.f32 %v176, %v260
        %v262 = vand.u32 %v261, 4294901760
        %v263 = vsub.f32 %v261, %v262
        %v264 = vand.u32 %v263, 4294901760
        %265 = vmatmul.f32.gmra.mxu0 %v264
        %v266 = vpop.f32.mrf.mxu0
        %v267 = vadd.f32 0.0, %v266
        %v268 = vand.u32 %v179, 4294901760
        %v269 = vsub.f32 %v179, %v268
        %v270 = vand.u32 %v269, 4294901760
        %v271 = vsub.f32 %v269, %v270
        %v272 = vand.u32 %v271, 4294901760
        %273 = vmatmul.f32.gmra.mxu0 %v272
        %v274 = vpop.f32.mrf.mxu0
        %v275 = vadd.f32 0.0, %v274
        %v276 = vand.u32 %v182, 4294901760
        %v277 = vsub.f32 %v182, %v276
        %v278 = vand.u32 %v277, 4294901760
        %v279 = vsub.f32 %v277, %v278
        %v280 = vand.u32 %v279, 4294901760
        %281 = vmatmul.f32.gmra.mxu0 %v280
        %v282 = vpop.f32.mrf.mxu0
        %v283 = vadd.f32 0.0, %v282
        %v284 = vand.u32 %v185, 4294901760
        %v285 = vsub.f32 %v185, %v284
        %v286 = vand.u32 %v285, 4294901760
        %v287 = vsub.f32 %v285, %v286
        %v288 = vand.u32 %v287, 4294901760
        %289 = vmatmul.f32.gmra.mxu0 %v288
        %v290 = vpop.f32.mrf.mxu0
        %v291 = vadd.f32 0.0, %v290
        %v292 = vand.u32 %v188, 4294901760
        %v293 = vsub.f32 %v188, %v292
        %v294 = vand.u32 %v293, 4294901760
        %v295 = vsub.f32 %v293, %v294
        %v296 = vand.u32 %v295, 4294901760
        %297 = vmatmul.f32.gmra.mxu0 %v296
        %v298 = vpop.f32.mrf.mxu0
        %v299 = vadd.f32 0.0, %v298
        %v300 = vand.u32 %v191, 4294901760
        %v301 = vsub.f32 %v191, %v300
        %v302 = vand.u32 %v301, 4294901760
        %v303 = vsub.f32 %v301, %v302
        %v304 = vand.u32 %v303, 4294901760
        %305 = vmatmul.f32.gmra.mxu0 %v304
        %v306 = vpop.f32.mrf.mxu0
        %v307 = vadd.f32 0.0, %v306
        %v308 = vand.u32 %v194, 4294901760
        %v309 = vsub.f32 %v194, %v308
        %v310 = vand.u32 %v309, 4294901760
        %v311 = vsub.f32 %v309, %v310
        %v312 = vand.u32 %v311, 4294901760
        %313 = vmatmul.f32.gmra.mxu0 %v312
        %v314 = vpop.f32.mrf.mxu0
        %v315 = vadd.f32 0.0, %v314
        %v316 = vand.u32 %v197, 4294901760
        %v317 = vsub.f32 %v197, %v316
        %v318 = vand.u32 %v317, 4294901760
        %v319 = vsub.f32 %v317, %v318
        %v320 = vand.u32 %v319, 4294901760
        %321 = vmatmul.f32.gmra.mxu0 %v320
        %v322 = vpop.f32.mrf.mxu0
        %v323 = vadd.f32 0.0, %v322
        %v324 = vand.u32 %v200, 4294901760
        %v325 = vsub.f32 %v200, %v324
        %v326 = vand.u32 %v325, 4294901760
        %v327 = vsub.f32 %v325, %v326
        %v328 = vand.u32 %v327, 4294901760
        %329 = vmatmul.f32.gmra.mxu0 %v328
        %v330 = vpop.f32.mrf.mxu0
        %v331 = vadd.f32 0.0, %v330
        %v332 = vand.u32 %v203, 4294901760
        %v333 = vsub.f32 %v203, %v332
        %v334 = vand.u32 %v333, 4294901760
        %v335 = vsub.f32 %v333, %v334
        %v336 = vand.u32 %v335, 4294901760
        %337 = vmatmul.f32.gmra.mxu0 %v336
        %v338 = vpop.f32.mrf.mxu0
        %v339 = vadd.f32 0.0, %v338
        %v340 = vand.u32 %v206, 4294901760
        %v341 = vsub.f32 %v206, %v340
        %v342 = vand.u32 %v341, 4294901760
        %v343 = vsub.f32 %v341, %v342
        %v344 = vand.u32 %v343, 4294901760
        %345 = vmatmul.f32.gmra.mxu0 %v344
        %v346 = vpop.f32.mrf.mxu0
        %v347 = vadd.f32 0.0, %v346
        %v348 = vand.u32 %v209, 4294901760
        %v349 = vsub.f32 %v209, %v348
        %v350 = vand.u32 %v349, 4294901760
        %v351 = vsub.f32 %v349, %v350
        %v352 = vand.u32 %v351, 4294901760
        %353 = vmatmul.f32.gmra.mxu0 %v352
        %v354 = vpop.f32.mrf.mxu0
        %v355 = vadd.f32 0.0, %v354
        %356 = vdwg.mxu0
        %357 = vmatpush.msra.mxu0 0.0
        %358 = vmatpush.msra.mxu0 0.0
        %359 = vmatpush.msra.mxu0 0.0
        %360 = vmatpush.msra.mxu0 0.0
        %361 = vmatpush.msra.mxu0 0.0
        %362 = vmatpush.msra.mxu0 0.0
        %363 = vmatpush.msra.mxu0 0.0
        %364 = vmatpush.msra.mxu0 0.0
        %365 = vmatpush.msra.mxu0 0.0
        %366 = vmatpush.msra.mxu0 0.0
        %367 = vmatpush.msra.mxu0 0.0
        %368 = vmatpush.msra.mxu0 0.0
        %369 = vmatpush.msra.mxu0 0.0
        %370 = vmatpush.msra.mxu0 0.0
        %371 = vmatpush.msra.mxu0 0.0
        %v372 = vand.u32 %v161, 4294901760
        %v373 = vsub.f32 %v161, %v372
        %v374 = vand.u32 %v373, 4294901760
        %v375 = vsub.f32 %v373, %v374
        %v376 = vand.u32 %v375, 4294901760
        %377 = vmatpush.msra.mxu0 %v376
        %v378 = vand.u32 %v164, 4294901760
        %379 = vmatmul.f32.gmra.mxu0 %v378
        %v380 = vpop.f32.mrf.mxu0
        %v381 = vadd.f32 %v235, %v380
        %v382 = vand.u32 %v167, 4294901760
        %383 = vmatmul.f32.gmra.mxu0 %v382
        %v384 = vpop.f32.mrf.mxu0
        %v385 = vadd.f32 %v243, %v384
        %v386 = vand.u32 %v170, 4294901760
        %387 = vmatmul.f32.gmra.mxu0 %v386
        %v388 = vpop.f32.mrf.mxu0
        %v389 = vadd.f32 %v251, %v388
        %v390 = vand.u32 %v173, 4294901760
        %391 = vmatmul.f32.gmra.mxu0 %v390
        %v392 = vpop.f32.mrf.mxu0
        %v393 = vadd.f32 %v259, %v392
        %v394 = vand.u32 %v176, 4294901760
        %395 = vmatmul.f32.gmra.mxu0 %v394
        %v396 = vpop.f32.mrf.mxu0
        %v397 = vadd.f32 %v267, %v396
        %v398 = vand.u32 %v179, 4294901760
        %399 = vmatmul.f32.gmra.mxu0 %v398
        %v400 = vpop.f32.mrf.mxu0
        %v401 = vadd.f32 %v275, %v400
        %v402 = vand.u32 %v182, 4294901760
        %403 = vmatmul.f32.gmra.mxu0 %v402
        %v404 = vpop.f32.mrf.mxu0
        %v405 = vadd.f32 %v283, %v404
        %v406 = vand.u32 %v185, 4294901760
        %407 = vmatmul.f32.gmra.mxu0 %v406
        %v408 = vpop.f32.mrf.mxu0
        %v409 = vadd.f32 %v291, %v408
        %v410 = vand.u32 %v188, 4294901760
        %411 = vmatmul.f32.gmra.mxu0 %v410
        %v412 = vpop.f32.mrf.mxu0
        %v413 = vadd.f32 %v299, %v412
        %v414 = vand.u32 %v191, 4294901760
        %415 = vmatmul.f32.gmra.mxu0 %v414
        %v416 = vpop.f32.mrf.mxu0
        %v417 = vadd.f32 %v307, %v416
        %v418 = vand.u32 %v194, 4294901760
        %419 = vmatmul.f32.gmra.mxu0 %v418
        %v420 = vpop.f32.mrf.mxu0
        %v421 = vadd.f32 %v315, %v420
        %v422 = vand.u32 %v197, 4294901760
        %423 = vmatmul.f32.gmra.mxu0 %v422
        %v424 = vpop.f32.mrf.mxu0
        %v425 = vadd.f32 %v323, %v424
        %v426 = vand.u32 %v200, 4294901760
        %427 = vmatmul.f32.gmra.mxu0 %v426
        %v428 = vpop.f32.mrf.mxu0
        %v429 = vadd.f32 %v331, %v428
        %v430 = vand.u32 %v203, 4294901760
        %431 = vmatmul.f32.gmra.mxu0 %v430
        %v432 = vpop.f32.mrf.mxu0
        %v433 = vadd.f32 %v339, %v432
        %v434 = vand.u32 %v206, 4294901760
        %435 = vmatmul.f32.gmra.mxu0 %v434
        %v436 = vpop.f32.mrf.mxu0
        %v437 = vadd.f32 %v347, %v436
        %v438 = vand.u32 %v209, 4294901760
        %439 = vmatmul.f32.gmra.mxu0 %v438
        %v440 = vpop.f32.mrf.mxu0
        %v441 = vadd.f32 %v355, %v440
        %442 = vdwg.mxu0
        %443 = vmatpush.msra.mxu0 0.0
        %444 = vmatpush.msra.mxu0 0.0
        %445 = vmatpush.msra.mxu0 0.0
        %446 = vmatpush.msra.mxu0 0.0
        %447 = vmatpush.msra.mxu0 0.0
        %448 = vmatpush.msra.mxu0 0.0
        %449 = vmatpush.msra.mxu0 0.0
        %450 = vmatpush.msra.mxu0 0.0
        %451 = vmatpush.msra.mxu0 0.0
        %452 = vmatpush.msra.mxu0 0.0
        %453 = vmatpush.msra.mxu0 0.0
        %454 = vmatpush.msra.mxu0 0.0
        %455 = vmatpush.msra.mxu0 0.0
        %456 = vmatpush.msra.mxu0 0.0
        %457 = vmatpush.msra.mxu0 0.0
        %v458 = vand.u32 %v161, 4294901760
        %v459 = vsub.f32 %v161, %v458
        %460 = vmatpush.msra.mxu0 %v459
        %v461 = vand.u32 %v164, 4294901760
        %v462 = vsub.f32 %v164, %v461
        %463 = vmatmul.f32.gmra.mxu0 %v462
        %v464 = vpop.f32.mrf.mxu0
        %v465 = vadd.f32 %v381, %v464
        %v466 = vand.u32 %v167, 4294901760
        %v467 = vsub.f32 %v167, %v466
        %468 = vmatmul.f32.gmra.mxu0 %v467
        %v469 = vpop.f32.mrf.mxu0
        %v470 = vadd.f32 %v385, %v469
        %v471 = vand.u32 %v170, 4294901760
        %v472 = vsub.f32 %v170, %v471
        %473 = vmatmul.f32.gmra.mxu0 %v472
        %v474 = vpop.f32.mrf.mxu0
        %v475 = vadd.f32 %v389, %v474
        %v476 = vand.u32 %v173, 4294901760
        %v477 = vsub.f32 %v173, %v476
        %478 = vmatmul.f32.gmra.mxu0 %v477
        %v479 = vpop.f32.mrf.mxu0
        %v480 = vadd.f32 %v393, %v479
        %v481 = vand.u32 %v176, 4294901760
        %v482 = vsub.f32 %v176, %v481
        %483 = vmatmul.f32.gmra.mxu0 %v482
        %v484 = vpop.f32.mrf.mxu0
        %v485 = vadd.f32 %v397, %v484
        %v486 = vand.u32 %v179, 4294901760
        %v487 = vsub.f32 %v179, %v486
        %488 = vmatmul.f32.gmra.mxu0 %v487
        %v489 = vpop.f32.mrf.mxu0
        %v490 = vadd.f32 %v401, %v489
        %v491 = vand.u32 %v182, 4294901760
        %v492 = vsub.f32 %v182, %v491
        %493 = vmatmul.f32.gmra.mxu0 %v492
        %v494 = vpop.f32.mrf.mxu0
        %v495 = vadd.f32 %v405, %v494
        %v496 = vand.u32 %v185, 4294901760
        %v497 = vsub.f32 %v185, %v496
        %498 = vmatmul.f32.gmra.mxu0 %v497
        %v499 = vpop.f32.mrf.mxu0
        %v500 = vadd.f32 %v409, %v499
        %v501 = vand.u32 %v188, 4294901760
        %v502 = vsub.f32 %v188, %v501
        %503 = vmatmul.f32.gmra.mxu0 %v502
        %v504 = vpop.f32.mrf.mxu0
        %v505 = vadd.f32 %v413, %v504
        %v506 = vand.u32 %v191, 4294901760
        %v507 = vsub.f32 %v191, %v506
        %508 = vmatmul.f32.gmra.mxu0 %v507
        %v509 = vpop.f32.mrf.mxu0
        %v510 = vadd.f32 %v417, %v509
        %v511 = vand.u32 %v194, 4294901760
        %v512 = vsub.f32 %v194, %v511
        %513 = vmatmul.f32.gmra.mxu0 %v512
        %v514 = vpop.f32.mrf.mxu0
        %v515 = vadd.f32 %v421, %v514
        %v516 = vand.u32 %v197, 4294901760
        %v517 = vsub.f32 %v197, %v516
        %518 = vmatmul.f32.gmra.mxu0 %v517
        %v519 = vpop.f32.mrf.mxu0
        %v520 = vadd.f32 %v425, %v519
        %v521 = vand.u32 %v200, 4294901760
        %v522 = vsub.f32 %v200, %v521
        %523 = vmatmul.f32.gmra.mxu0 %v522
        %v524 = vpop.f32.mrf.mxu0
        %v525 = vadd.f32 %v429, %v524
        %v526 = vand.u32 %v203, 4294901760
        %v527 = vsub.f32 %v203, %v526
        %528 = vmatmul.f32.gmra.mxu0 %v527
        %v529 = vpop.f32.mrf.mxu0
        %v530 = vadd.f32 %v433, %v529
        %v531 = vand.u32 %v206, 4294901760
        %v532 = vsub.f32 %v206, %v531
        %533 = vmatmul.f32.gmra.mxu0 %v532
        %v534 = vpop.f32.mrf.mxu0
        %v535 = vadd.f32 %v437, %v534
        %v536 = vand.u32 %v209, 4294901760
        %v537 = vsub.f32 %v209, %v536
        %538 = vmatmul.f32.gmra.mxu0 %v537
        %v539 = vpop.f32.mrf.mxu0
        %v540 = vadd.f32 %v441, %v539
        %541 = vdwg.mxu0
        %542 = vmatpush.msra.mxu0 0.0
        %543 = vmatpush.msra.mxu0 0.0
        %544 = vmatpush.msra.mxu0 0.0
        %545 = vmatpush.msra.mxu0 0.0
        %546 = vmatpush.msra.mxu0 0.0
        %547 = vmatpush.msra.mxu0 0.0
        %548 = vmatpush.msra.mxu0 0.0
        %549 = vmatpush.msra.mxu0 0.0
        %550 = vmatpush.msra.mxu0 0.0
        %551 = vmatpush.msra.mxu0 0.0
        %552 = vmatpush.msra.mxu0 0.0
        %553 = vmatpush.msra.mxu0 0.0
        %554 = vmatpush.msra.mxu0 0.0
        %555 = vmatpush.msra.mxu0 0.0
        %556 = vmatpush.msra.mxu0 0.0
        %v557 = vand.u32 %v161, 4294901760
        %558 = vmatpush.msra.mxu0 %v557
        %v559 = vand.u32 %v164, 4294901760
        %v560 = vsub.f32 %v164, %v559
        %v561 = vand.u32 %v560, 4294901760
        %562 = vmatmul.f32.gmra.mxu0 %v561
        %v563 = vpop.f32.mrf.mxu0
        %v564 = vadd.f32 %v465, %v563
        %v565 = vand.u32 %v167, 4294901760
        %v566 = vsub.f32 %v167, %v565
        %v567 = vand.u32 %v566, 4294901760
        %568 = vmatmul.f32.gmra.mxu0 %v567
        %v569 = vpop.f32.mrf.mxu0
        %v570 = vadd.f32 %v470, %v569
        %v571 = vand.u32 %v170, 4294901760
        %v572 = vsub.f32 %v170, %v571
        %v573 = vand.u32 %v572, 4294901760
        %574 = vmatmul.f32.gmra.mxu0 %v573
        %v575 = vpop.f32.mrf.mxu0
        %v576 = vadd.f32 %v475, %v575
        %v577 = vand.u32 %v173, 4294901760
        %v578 = vsub.f32 %v173, %v577
        %v579 = vand.u32 %v578, 4294901760
        %580 = vmatmul.f32.gmra.mxu0 %v579
        %v581 = vpop.f32.mrf.mxu0
        %v582 = vadd.f32 %v480, %v581
        %v583 = vand.u32 %v176, 4294901760
        %v584 = vsub.f32 %v176, %v583
        %v585 = vand.u32 %v584, 4294901760
        %586 = vmatmul.f32.gmra.mxu0 %v585
        %v587 = vpop.f32.mrf.mxu0
        %v588 = vadd.f32 %v485, %v587
        %v589 = vand.u32 %v179, 4294901760
        %v590 = vsub.f32 %v179, %v589
        %v591 = vand.u32 %v590, 4294901760
        %592 = vmatmul.f32.gmra.mxu0 %v591
        %v593 = vpop.f32.mrf.mxu0
        %v594 = vadd.f32 %v490, %v593
        %v595 = vand.u32 %v182, 4294901760
        %v596 = vsub.f32 %v182, %v595
        %v597 = vand.u32 %v596, 4294901760
        %598 = vmatmul.f32.gmra.mxu0 %v597
        %v599 = vpop.f32.mrf.mxu0
        %v600 = vadd.f32 %v495, %v599
        %v601 = vand.u32 %v185, 4294901760
        %v602 = vsub.f32 %v185, %v601
        %v603 = vand.u32 %v602, 4294901760
        %604 = vmatmul.f32.gmra.mxu0 %v603
        %v605 = vpop.f32.mrf.mxu0
        %v606 = vadd.f32 %v500, %v605
        %v607 = vand.u32 %v188, 4294901760
        %v608 = vsub.f32 %v188, %v607
        %v609 = vand.u32 %v608, 4294901760
        %610 = vmatmul.f32.gmra.mxu0 %v609
        %v611 = vpop.f32.mrf.mxu0
        %v612 = vadd.f32 %v505, %v611
        %v613 = vand.u32 %v191, 4294901760
        %v614 = vsub.f32 %v191, %v613
        %v615 = vand.u32 %v614, 4294901760
        %616 = vmatmul.f32.gmra.mxu0 %v615
        %v617 = vpop.f32.mrf.mxu0
        %v618 = vadd.f32 %v510, %v617
        %v619 = vand.u32 %v194, 4294901760
        %v620 = vsub.f32 %v194, %v619
        %v621 = vand.u32 %v620, 4294901760
        %622 = vmatmul.f32.gmra.mxu0 %v621
        %v623 = vpop.f32.mrf.mxu0
        %v624 = vadd.f32 %v515, %v623
        %v625 = vand.u32 %v197, 4294901760
        %v626 = vsub.f32 %v197, %v625
        %v627 = vand.u32 %v626, 4294901760
        %628 = vmatmul.f32.gmra.mxu0 %v627
        %v629 = vpop.f32.mrf.mxu0
        %v630 = vadd.f32 %v520, %v629
        %v631 = vand.u32 %v200, 4294901760
        %v632 = vsub.f32 %v200, %v631
        %v633 = vand.u32 %v632, 4294901760
        %634 = vmatmul.f32.gmra.mxu0 %v633
        %v635 = vpop.f32.mrf.mxu0
        %v636 = vadd.f32 %v525, %v635
        %v637 = vand.u32 %v203, 4294901760
        %v638 = vsub.f32 %v203, %v637
        %v639 = vand.u32 %v638, 4294901760
        %640 = vmatmul.f32.gmra.mxu0 %v639
        %v641 = vpop.f32.mrf.mxu0
        %v642 = vadd.f32 %v530, %v641
        %v643 = vand.u32 %v206, 4294901760
        %v644 = vsub.f32 %v206, %v643
        %v645 = vand.u32 %v644, 4294901760
        %646 = vmatmul.f32.gmra.mxu0 %v645
        %v647 = vpop.f32.mrf.mxu0
        %v648 = vadd.f32 %v535, %v647
        %v649 = vand.u32 %v209, 4294901760
        %v650 = vsub.f32 %v209, %v649
        %v651 = vand.u32 %v650, 4294901760
        %652 = vmatmul.f32.gmra.mxu0 %v651
        %v653 = vpop.f32.mrf.mxu0
        %v654 = vadd.f32 %v540, %v653
        %655 = vdwg.mxu0
        %656 = vmatpush.msra.mxu0 0.0
        %657 = vmatpush.msra.mxu0 0.0
        %658 = vmatpush.msra.mxu0 0.0
        %659 = vmatpush.msra.mxu0 0.0
        %660 = vmatpush.msra.mxu0 0.0
        %661 = vmatpush.msra.mxu0 0.0
        %662 = vmatpush.msra.mxu0 0.0
        %663 = vmatpush.msra.mxu0 0.0
        %664 = vmatpush.msra.mxu0 0.0
        %665 = vmatpush.msra.mxu0 0.0
        %666 = vmatpush.msra.mxu0 0.0
        %667 = vmatpush.msra.mxu0 0.0
        %668 = vmatpush.msra.mxu0 0.0
        %669 = vmatpush.msra.mxu0 0.0
        %670 = vmatpush.msra.mxu0 0.0
        %v671 = vand.u32 %v161, 4294901760
        %v672 = vsub.f32 %v161, %v671
        %v673 = vand.u32 %v672, 4294901760
        %674 = vmatpush.msra.mxu0 %v673
        %v675 = vand.u32 %v164, 4294901760
        %676 = vmatmul.f32.gmra.mxu0 %v675
        %v677 = vpop.f32.mrf.mxu0
        %v678 = vadd.f32 %v564, %v677
        %v679 = vand.u32 %v167, 4294901760
        %680 = vmatmul.f32.gmra.mxu0 %v679
        %v681 = vpop.f32.mrf.mxu0
        %v682 = vadd.f32 %v570, %v681
        %v683 = vand.u32 %v170, 4294901760
        %684 = vmatmul.f32.gmra.mxu0 %v683
        %v685 = vpop.f32.mrf.mxu0
        %v686 = vadd.f32 %v576, %v685
        %v687 = vand.u32 %v173, 4294901760
        %688 = vmatmul.f32.gmra.mxu0 %v687
        %v689 = vpop.f32.mrf.mxu0
        %v690 = vadd.f32 %v582, %v689
        %v691 = vand.u32 %v176, 4294901760
        %692 = vmatmul.f32.gmra.mxu0 %v691
        %v693 = vpop.f32.mrf.mxu0
        %v694 = vadd.f32 %v588, %v693
        %v695 = vand.u32 %v179, 4294901760
        %696 = vmatmul.f32.gmra.mxu0 %v695
        %v697 = vpop.f32.mrf.mxu0
        %v698 = vadd.f32 %v594, %v697
        %v699 = vand.u32 %v182, 4294901760
        %700 = vmatmul.f32.gmra.mxu0 %v699
        %v701 = vpop.f32.mrf.mxu0
        %v702 = vadd.f32 %v600, %v701
        %v703 = vand.u32 %v185, 4294901760
        %704 = vmatmul.f32.gmra.mxu0 %v703
        %v705 = vpop.f32.mrf.mxu0
        %v706 = vadd.f32 %v606, %v705
        %v707 = vand.u32 %v188, 4294901760
        %708 = vmatmul.f32.gmra.mxu0 %v707
        %v709 = vpop.f32.mrf.mxu0
        %v710 = vadd.f32 %v612, %v709
        %v711 = vand.u32 %v191, 4294901760
        %712 = vmatmul.f32.gmra.mxu0 %v711
        %v713 = vpop.f32.mrf.mxu0
        %v714 = vadd.f32 %v618, %v713
        %v715 = vand.u32 %v194, 4294901760
        %716 = vmatmul.f32.gmra.mxu0 %v715
        %v717 = vpop.f32.mrf.mxu0
        %v718 = vadd.f32 %v624, %v717
        %v719 = vand.u32 %v197, 4294901760
        %720 = vmatmul.f32.gmra.mxu0 %v719
        %v721 = vpop.f32.mrf.mxu0
        %v722 = vadd.f32 %v630, %v721
        %v723 = vand.u32 %v200, 4294901760
        %724 = vmatmul.f32.gmra.mxu0 %v723
        %v725 = vpop.f32.mrf.mxu0
        %v726 = vadd.f32 %v636, %v725
        %v727 = vand.u32 %v203, 4294901760
        %728 = vmatmul.f32.gmra.mxu0 %v727
        %v729 = vpop.f32.mrf.mxu0
        %v730 = vadd.f32 %v642, %v729
        %v731 = vand.u32 %v206, 4294901760
        %732 = vmatmul.f32.gmra.mxu0 %v731
        %v733 = vpop.f32.mrf.mxu0
        %v734 = vadd.f32 %v648, %v733
        %v735 = vand.u32 %v209, 4294901760
        %736 = vmatmul.f32.gmra.mxu0 %v735
        %v737 = vpop.f32.mrf.mxu0
        %v738 = vadd.f32 %v654, %v737
        %739 = vdwg.mxu0
        %740 = vmatpush.msra.mxu0 0.0
        %741 = vmatpush.msra.mxu0 0.0
        %742 = vmatpush.msra.mxu0 0.0
        %743 = vmatpush.msra.mxu0 0.0
        %744 = vmatpush.msra.mxu0 0.0
        %745 = vmatpush.msra.mxu0 0.0
        %746 = vmatpush.msra.mxu0 0.0
        %747 = vmatpush.msra.mxu0 0.0
        %748 = vmatpush.msra.mxu0 0.0
        %749 = vmatpush.msra.mxu0 0.0
        %750 = vmatpush.msra.mxu0 0.0
        %751 = vmatpush.msra.mxu0 0.0
        %752 = vmatpush.msra.mxu0 0.0
        %753 = vmatpush.msra.mxu0 0.0
        %754 = vmatpush.msra.mxu0 0.0
        %v755 = vand.u32 %v161, 4294901760
        %756 = vmatpush.msra.mxu0 %v755
        %v757 = vand.u32 %v164, 4294901760
        %758 = vmatmul.f32.gmra.mxu0 %v757
        %v759 = vpop.f32.mrf.mxu0
        %v760 = vadd.f32 %v678, %v759
        %v761 = vand.u32 %v167, 4294901760
        %762 = vmatmul.f32.gmra.mxu0 %v761
        %v763 = vpop.f32.mrf.mxu0
        %v764 = vadd.f32 %v682, %v763
        %v765 = vand.u32 %v170, 4294901760
        %766 = vmatmul.f32.gmra.mxu0 %v765
        %v767 = vpop.f32.mrf.mxu0
        %v768 = vadd.f32 %v686, %v767
        %v769 = vand.u32 %v173, 4294901760
        %770 = vmatmul.f32.gmra.mxu0 %v769
        %v771 = vpop.f32.mrf.mxu0
        %v772 = vadd.f32 %v690, %v771
        %v773 = vand.u32 %v176, 4294901760
        %774 = vmatmul.f32.gmra.mxu0 %v773
        %v775 = vpop.f32.mrf.mxu0
        %v776 = vadd.f32 %v694, %v775
        %v777 = vand.u32 %v179, 4294901760
        %778 = vmatmul.f32.gmra.mxu0 %v777
        %v779 = vpop.f32.mrf.mxu0
        %v780 = vadd.f32 %v698, %v779
        %v781 = vand.u32 %v182, 4294901760
        %782 = vmatmul.f32.gmra.mxu0 %v781
        %v783 = vpop.f32.mrf.mxu0
        %v784 = vadd.f32 %v702, %v783
        %v785 = vand.u32 %v185, 4294901760
        %786 = vmatmul.f32.gmra.mxu0 %v785
        %v787 = vpop.f32.mrf.mxu0
        %v788 = vadd.f32 %v706, %v787
        %v789 = vand.u32 %v188, 4294901760
        %790 = vmatmul.f32.gmra.mxu0 %v789
        %v791 = vpop.f32.mrf.mxu0
        %v792 = vadd.f32 %v710, %v791
        %v793 = vand.u32 %v191, 4294901760
        %794 = vmatmul.f32.gmra.mxu0 %v793
        %v795 = vpop.f32.mrf.mxu0
        %v796 = vadd.f32 %v714, %v795
        %v797 = vand.u32 %v194, 4294901760
        %798 = vmatmul.f32.gmra.mxu0 %v797
        %v799 = vpop.f32.mrf.mxu0
        %v800 = vadd.f32 %v718, %v799
        %v801 = vand.u32 %v197, 4294901760
        %802 = vmatmul.f32.gmra.mxu0 %v801
        %v803 = vpop.f32.mrf.mxu0
        %v804 = vadd.f32 %v722, %v803
        %v805 = vand.u32 %v200, 4294901760
        %806 = vmatmul.f32.gmra.mxu0 %v805
        %v807 = vpop.f32.mrf.mxu0
        %v808 = vadd.f32 %v726, %v807
        %v809 = vand.u32 %v203, 4294901760
        %810 = vmatmul.f32.gmra.mxu0 %v809
        %v811 = vpop.f32.mrf.mxu0
        %v812 = vadd.f32 %v730, %v811
        %v813 = vand.u32 %v206, 4294901760
        %814 = vmatmul.f32.gmra.mxu0 %v813
        %v815 = vpop.f32.mrf.mxu0
        %v816 = vadd.f32 %v734, %v815
        %v817 = vand.u32 %v209, 4294901760
        %818 = vmatmul.f32.gmra.mxu0 %v817
        %v819 = vpop.f32.mrf.mxu0
        %v820 = vadd.f32 %v738, %v819
        %821 = vdwg.mxu0
        %v822 = vmax.f32 %v760, 0.0
        %v823 = vmax.f32 %v764, 0.0
        %v824 = vmax.f32 %v768, 0.0
        %v825 = vmax.f32 %v772, 0.0
        %v826 = vmax.f32 %v776, 0.0
        %v827 = vmax.f32 %v780, 0.0
        %v828 = vmax.f32 %v784, 0.0
        %v829 = vmax.f32 %v788, 0.0
        %v830 = vmax.f32 %v792, 0.0
        %v831 = vmax.f32 %v796, 0.0
        %v832 = vmax.f32 %v800, 0.0
        %v833 = vmax.f32 %v804, 0.0
        %v834 = vmax.f32 %v808, 0.0
        %v835 = vmax.f32 %v812, 0.0
        %v836 = vmax.f32 %v816, 0.0
        %v837 = vmax.f32 %v820, 0.0
        %838 = vst [vmem:[%s137] sm:$0xff] %v822
        %839 = vst [vmem:[%s137 + $0x8] sm:$0xff] %v823
        %840 = vst [vmem:[%s137 + $0x10] sm:$0xff] %v824
        %841 = vst [vmem:[%s137 + $0x18] sm:$0xff] %v825
        %842 = vst [vmem:[%s137 + $0x20] sm:$0xff] %v826
        %843 = vst [vmem:[%s137 + $0x28] sm:$0xff] %v827
        %844 = vst [vmem:[%s137 + $0x30] sm:$0xff] %v828
        %845 = vst [vmem:[%s137 + $0x38] sm:$0xff] %v829
        %846 = vst [vmem:[%s137 + $0x40] sm:$0xff] %v830
        %847 = vst [vmem:[%s137 + $0x48] sm:$0xff] %v831
        %848 = vst [vmem:[%s137 + $0x50] sm:$0xff] %v832
        %849 = vst [vmem:[%s137 + $0x58] sm:$0xff] %v833
        %850 = vst [vmem:[%s137 + $0x60] sm:$0xff] %v834
        %851 = vst [vmem:[%s137 + $0x68] sm:$0xff] %v835
        %852 = vst [vmem:[%s137 + $0x70] sm:$0xff] %v836
        %853 = vst [vmem:[%s137 + $0x78] sm:$0xff] %v837
        %s854 = sand.u32 %s71, 1
        %s855 = scalar_lea.sflag [#allocation3], %s854
        %s856 = sand.u32 %s71, 1
        %s857 = smul.addr %s856, 128
        %s858 = scalar_lea.vmem [#allocation2], %s857
        // Predicated region
        $region29: #{tpu_custom_call.1} parent=27 // pred_check
          %p859 = pneg %p81
        $region30: #{tpu_custom_call.1} parent=27 // pred_check_branch
          %861 = sbr.rel (%p859) target = $region32
        $region31: #{tpu_custom_call.1} parent=27 // pred_region
          %s862 = smul.u32 16, %s16
          %864 = vsyncadd %s855, 0
          %s865 = smul.addr %s862, 8
          %s866 = scalar_lea.hbm %s2, %s865
          %s867 = sshll.u32 %s858, 4
          %s868 = int_to_ptr.vmem [resolvable:$true] %s867
          %s869 = sshll.u32 %s866, 4
          %s870 = int_to_ptr.hbm [resolvable:$true] %s869
          %875 = dma.vmem_to_hbm [thread:$0]  %s868, 2048, %s870, %s855, 128, 128, 8
        $region32: #{tpu_custom_call.1} parent=27 // pred_fallthru
          _
      $region28: #{tpu_custom_call.1} parent=5 // pred_fallthru
        _
      %p876 = scmp.le.s32.totalorder 2, %s11
      // Predicated region
      $region33: #{tpu_custom_call.1} parent=5 // pred_check
        %p877 = pneg %p876
      $region34: #{tpu_custom_call.1} parent=5 // pred_check_branch
        %879 = sbr.rel (%p877) target = $region36
      $region35: #{tpu_custom_call.1} parent=5 // pred_region
        %s880 = ssub.s32 %s11, 2
        // Predicated region
        $region37: #{tpu_custom_call.1} parent=35 // pred_check
          %p881 = pneg %p87
        $region38: #{tpu_custom_call.1} parent=35 // pred_check_branch
          %883 = sbr.rel (%p881) target = $region40
        $region39: #{tpu_custom_call.1} parent=35 // pred_region
          %s884 = sand.u32 %s72, 1
          %s885 = scalar_lea.sflag [#allocation3], %s884
          %s886 = sand.u32 %s72, 1
          %s887 = smul.addr %s886, 128
          %s888 = scalar_lea.vmem [#allocation2], %s887
          %890 = dma.done %s885, 2048
        $region40: #{tpu_custom_call.1} parent=35 // pred_fallthru
          _
      $region36: #{tpu_custom_call.1} parent=5 // pred_fallthru
        _
    $region6: #{tpu_custom_call.1} parent=1 // loop_footer
      %s15 = sadd.s32 1, %s11
    $region7: #{tpu_custom_call.1} parent=1 // loop_footer_branch
      %10 = sbr.rel target = $region3
    $region8: #{tpu_custom_call.1} parent=1 // loop_exit
      _
    %891 = vsyncpa [#allocation3], 1
    %s892 = scalar_lea.sflag [#allocation3], 1
    %893 = vsyncpa %s892, 1

</llo_original>
